<compile_context>
chip_gen: v5e
topology: v5e:2x2
jax: 0.10.0
libtpu: 0.0.40
codegen_flags: <defaults>
</compile_context>

<pallas_src>
import numpy as np

import jax
import jax.numpy as jnp
from jax.experimental import pallas as pl
from jax.experimental.pallas import tpu as pltpu


def _round_up(x, m):
    return ((x + m - 1) // m) * m


def _cost_kernel(x_ref, p_ref, o_ref):
    # x_ref: (Dw, TN)   candidate rows on the lane axis
    # p_ref: (Dw+1, 1)  [weights..., fixed_cost] column
    # o_ref: (1, TN)    lane-dense per-row cost
    dw = x_ref.shape[0]
    x = x_ref[...].astype(jnp.float32)              # (Dw, TN)
    p = p_ref[...].astype(jnp.float32)              # (Dw+1, 1)
    w = p[:dw, :]                                   # (Dw, 1) -> lane-broadcast
    fc = p[dw:, :]                                  # (1, 1)
    lin = jnp.sum(x * w, axis=0, keepdims=True)     # VPU mul + tiny sublane reduce
    o_ref[...] = (lin + fc).astype(o_ref.dtype)


def _affine_cost_lanes(x_t, params, out_dtype):
    """x_t: (Dw, N) rows-on-lanes, params: (Dw+1, 1) -> (1, N) cost row."""
    Dw, N = x_t.shape
    LANE = 128

    # VMEM budget per pipeline slot (input block + output block), double-buffered
    # by the pipeliner => ~2x this in VMEM. Stays well under the scoped default
    # on v5e (16 MiB), v6e (32 MiB) and v7x (32 MiB scoped / 64 MiB physical).
    VMEM_TARGET = 4 * 1024 * 1024
    per_lane_bytes = (_round_up(Dw, 8) + 8) * 4     # padded input + output sublanes
    max_tn = max(LANE, (VMEM_TARGET // per_lane_bytes) // LANE * LANE)

    n_pad0 = _round_up(N, LANE)
    TN = min(max_tn, n_pad0)
    if n_pad0 > LANE:
        # Ensure >= 2 grid steps so v7x's two TensorCores both get work
        # (harmless on single-TC v5e/v6e).
        TN = min(TN, _round_up(pl.cdiv(n_pad0, 2), LANE))

    N_pad = _round_up(N, TN)
    if N_pad != N:
        x_t = jnp.pad(x_t, ((0, 0), (0, N_pad - N)))

    out = pl.pallas_call(
        _cost_kernel,
        out_shape=jax.ShapeDtypeStruct((1, N_pad), out_dtype),
        grid_spec=pltpu.PrefetchScalarGridSpec(
            num_scalar_prefetch=0,
            grid=(N_pad // TN,),
            in_specs=[
                pl.BlockSpec((Dw, TN), lambda i: (0, i)),
                pl.BlockSpec((Dw + 1, 1), lambda i: (0, 0)),
            ],
            out_specs=pl.BlockSpec((1, TN), lambda i: (0, i)),
        ),
        compiler_params=pltpu.CompilerParams(
            dimension_semantics=("parallel",),  # row blocks independent
        ),
    )(x_t, params)

    return out[:, :N]


def ingredient_cost_forward(X, fidelity_weights, fixed_cost):
    """ingredient_cost.forward: AffineFidelityCostModel(X)[:, 0] -> (B, 1)."""
    B, Q, D = X.shape
    out_dtype = X.dtype

    if B == 0:
        return jnp.zeros((0, 1), out_dtype)

    # Static fidelity dims (support negative indices like {-1: 1.0}).
    wdict = {int(d) % D: float(w) for d, w in fidelity_weights.items()}
    dims = sorted(wdict)
    lo, hi = dims[0], dims[-1] + 1
    Dw = hi - lo

    # Host-built constant parameter column: [w_lo ... w_{hi-1}, fixed_cost].
    params_np = np.zeros((Dw + 1, 1), np.float32)
    for d, w in wdict.items():
        params_np[d - lo, 0] = w
    if isinstance(fixed_cost, (int, float, np.floating, np.integer)):
        params_np[Dw, 0] = float(fixed_cost)
        params = jnp.asarray(params_np)
    else:
        # Traced fixed_cost (e.g. jit argument) still works.
        params = jnp.asarray(params_np).at[Dw, 0].set(
            jnp.asarray(fixed_cost, jnp.float32))

    # Single fused expression: q=0 slice + fidelity window + transpose.
    # Puts the B rows on the lane axis for the kernel; only Dw*B elements.
    x_t = jnp.transpose(X[:, 0, lo:hi], (1, 0))     # (Dw, B)

    out_row = _affine_cost_lanes(x_t, params, out_dtype)   # (1, B)
    return out_row.reshape(B, 1)


def _reference(X, fidelity_weights, fixed_cost):
    D = X.shape[-1]
    dims = sorted(int(d) % D for d in fidelity_weights)
    w = jnp.asarray([fidelity_weights[d] if d in fidelity_weights
                     else fidelity_weights[d - D] for d in dims], X.dtype)
    lin = jnp.einsum("...f,f->...", X[..., jnp.asarray(dims)], w)
    cost = fixed_cost + lin[..., None]   # (B, Q, 1)
    return cost[:, 0]                    # (B, 1)


if __name__ == "__main__":
    key = jax.random.PRNGKey(0)

    # Small, module-consistent shapes: batch=2 candidate sets, q=8 points, d=32 features.
    B, Q, D = 2, 8, 32
    X = jax.random.uniform(key, (B, Q, D), dtype=jnp.float32)
    fidelity_weights = {D - 2: 0.5, D - 1: 1.0}
    fixed_cost = 5.0

    out = ingredient_cost_forward(X, fidelity_weights, fixed_cost)
    out = jax.block_until_ready(out)
    ref = _reference(X, fidelity_weights, fixed_cost)
    assert out.shape == (B, 1), out.shape
    assert jnp.allclose(out, ref, atol=1e-5, rtol=1e-5), (out, ref)

    # Second check: exercises lane padding, a zero-weight in-window dim and a
    # multi-step ("parallel") grid.
    B2, Q2, D2 = 300, 4, 16
    X2 = jax.random.uniform(jax.random.PRNGKey(1), (B2, Q2, D2), dtype=jnp.float32)
    fw2 = {5: 0.25, 7: 1.0}
    out2 = jax.block_until_ready(ingredient_cost_forward(X2, fw2, 2.5))
    ref2 = _reference(X2, fw2, 2.5)
    assert out2.shape == (B2, 1), out2.shape
    assert jnp.allclose(out2, ref2, atol=1e-5, rtol=1e-5)

    print("KERNEL_OK")
</pallas_src>

<mosaic_0001>
module attributes {stable_mosaic.version = 11 : i64} {
  func.func @_cost_kernel(%arg0: i32, %arg1: memref<2x128xf32, #tpu.memory_space<vmem>>, %arg2: memref<3x1xf32, #tpu.memory_space<vmem>>, %arg3: memref<1x128xf32, #tpu.memory_space<vmem>>) attributes {dimension_semantics = [#tpu.dimension_semantics<parallel>], iteration_bounds = array<i64: 1>, scalar_prefetch = 0 : i64, scratch_operands = 0 : i64, tpu.core_type = #tpu.core_type<tc>, window_params = [{transform_indices = @transform_0, window_bounds = array<i64: 2, 128>}, {pipeline_mode = #tpu.pipeline_mode<synchronous>, transform_indices = @transform_1, window_bounds = array<i64: 3, 1>}, {transform_indices = @transform_2, window_bounds = array<i64: 1, 128>}]} {
    %c0 = arith.constant 0 : index
    %c0_0 = arith.constant 0 : index
    %0 = vector.load %arg1[%c0, %c0_0] : memref<2x128xf32, #tpu.memory_space<vmem>>, vector<2x128xf32>
    %c0_1 = arith.constant 0 : index
    %c0_2 = arith.constant 0 : index
    %1 = vector.load %arg2[%c0_1, %c0_2] : memref<3x1xf32, #tpu.memory_space<vmem>>, vector<3x1xf32>
    %2 = vector.extract_strided_slice %1 {offsets = [0, 0], sizes = [2, 1], strides = [1, 1]} : vector<3x1xf32> to vector<2x1xf32>
    %3 = vector.extract_strided_slice %1 {offsets = [2, 0], sizes = [1, 1], strides = [1, 1]} : vector<3x1xf32> to vector<1x1xf32>
    %4 = vector.broadcast %2 : vector<2x1xf32> to vector<2x128xf32>
    %5 = arith.mulf %0, %4 : vector<2x128xf32>
    %cst = arith.constant dense<0.000000e+00> : vector<128xf32>
    %6 = vector.multi_reduction <add>, %5, %cst [0] : vector<2x128xf32> to vector<128xf32>
    %7 = vector.shape_cast %6 : vector<128xf32> to vector<1x128xf32>
    %8 = vector.broadcast %3 : vector<1x1xf32> to vector<1x128xf32>
    %9 = arith.addf %7, %8 : vector<1x128xf32>
    %c0_3 = arith.constant 0 : index
    %c0_4 = arith.constant 0 : index
    %10 = vector.load %arg3[%c0_3, %c0_4] : memref<1x128xf32, #tpu.memory_space<vmem>>, vector<1x128xf32>
    tpu.vector_store %arg3[%c0_3, %c0_4], %9 {strides = array<i32>} : memref<1x128xf32, #tpu.memory_space<vmem>>, vector<1x128xf32>,
    return
  }
  func.func @transform_0(%arg0: i32) -> (i32, i32) {
    %c0_i32 = arith.constant 0 : i32
    %c0_i32_0 = arith.constant 0 : i32
    return %c0_i32, %arg0 : i32, i32
  }
  func.func @transform_1(%arg0: i32) -> (i32, i32) {
    %c0_i32 = arith.constant 0 : i32
    %c0_i32_0 = arith.constant 0 : i32
    %c0_i32_1 = arith.constant 0 : i32
    return %c0_i32, %c0_i32_0 : i32, i32
  }
  func.func @transform_2(%arg0: i32) -> (i32, i32) {
    %c0_i32 = arith.constant 0 : i32
    %c0_i32_0 = arith.constant 0 : i32
    return %c0_i32, %arg0 : i32, i32
  }
}

</mosaic_0001>

<llo_original>
// kernel: tpu_custom_call.1
$region0: #{tpu_custom_call.1}
  #allocation0 [shape = 'u32[]', space=smem, size = 0x4, offset = 0x4, fixed_abs, tag = 'smem constant byte address 0x4 - core index']
  #allocation1 [shape = 'u32[72,128]{1,0:T(1,128)}', space=vmem, size = 0x9000, scoped, tag = 'internal scratch']
  %s0 = inlined_call_operand.vmem [shape: f32[2,128], index: 0, kind: input, shape index: {}]
  %s1 = inlined_call_operand.vmem [shape: f32[3,1], index: 1, kind: input, shape index: {}]
  %s2 = inlined_call_operand.hbm [shape: f32[1,128], index: 2, kind: output, shape index: {}]
  %s3 = sld [smem:[#allocation0]]
  $region18: #{tpu_custom_call.1} parent=0
    _
  %s5 = ssub.s32 1, %s3
  %s6 = scalar_select 0, %s5, %s3
  $region1: #{tpu_custom_call.1} parent=0
    #allocation2 [shape = 'u8[512]{0}', space=vmem, size = 0x400, scoped, tag = 'output window, operand 0, single buffered']
    #allocation3 [shape = 's32[1]{0}', space=sflag, size = 0x4, scoped, tag = 'scoped memory for tpu_custom_call.1']
    %7 = vsyncpa [#allocation3], 0
    // Predicated region
    $region2: #{tpu_custom_call.1} parent=1 // pred_check
      _
    $region3: #{tpu_custom_call.1} parent=1 // pred_check_branch
      %9 = sbr.rel (0) target = $region5
    $region4: #{tpu_custom_call.1} parent=1 // pred_region
      _
    $region5: #{tpu_custom_call.1} parent=1 // pred_fallthru
      _
    // Predicated region
    $region6: #{tpu_custom_call.1} parent=1 // pred_check
      _
    $region7: #{tpu_custom_call.1} parent=1 // pred_check_branch
      %11 = sbr.rel (0) target = $region9
    $region8: #{tpu_custom_call.1} parent=1 // pred_region
      _
    $region9: #{tpu_custom_call.1} parent=1 // pred_fallthru
      _
    %v12 = vld [vmem:[%s0] sm:$0x3]
    %v13 = vld [vmem:[%s1] sm:$0x7]
    %15 = vset.pattern.permute.xlu0 0
    %16 = vperm.xlu0 %15, %v13
    %v17 = vpop.permute.xlu0 %16
    %v19 = vmul.f32 %v12, %v17
    %vm20 = vcmask 1041408
    %v21 = vsel %vm20, %v19, 0.0
    %v22 = vrot.slane %v21, 4
    %v23 = vadd.f32 %v21, %v22
    %v24 = vrot.slane %v23, 2
    %v25 = vadd.f32 %v23, %v24
    %v26 = vrot.slane %v25, 1
    %v27 = vadd.f32 %v25, %v26
    %v28 = vadd.f32 %v27, %v17
    %29 = vst [vmem:[#allocation2 - $0x2] sm:$0x4] %v28
    // Predicated region
    $region10: #{tpu_custom_call.1} parent=1 // pred_check
      _
    $region11: #{tpu_custom_call.1} parent=1 // pred_check_branch
      %31 = sbr.rel (0) target = $region13
    $region12: #{tpu_custom_call.1} parent=1 // pred_region
      %33 = vsyncadd [#allocation3], 0
      %s35 = sshll.u32 [#allocation2], 4
      %s36 = int_to_ptr.vmem [resolvable:$true] %s35
      %s37 = sshll.u32 %s2, 4
      %s38 = int_to_ptr.hbm [resolvable:$true] %s37
      %40 = dma.vmem_to_hbm [thread:$0]  %s36, 16, %s38, [#allocation3]
    $region13: #{tpu_custom_call.1} parent=1 // pred_fallthru
      _
    // Predicated region
    $region14: #{tpu_custom_call.1} parent=1 // pred_check
      _
    $region15: #{tpu_custom_call.1} parent=1 // pred_check_branch
      %42 = sbr.rel (0) target = $region17
    $region16: #{tpu_custom_call.1} parent=1 // pred_region
      %44 = dma.done [#allocation3], 16
    $region17: #{tpu_custom_call.1} parent=1 // pred_fallthru
      _
    %45 = vsyncpa [#allocation3], 1

</llo_original>
